<compile_context>
chip_gen: v6e
topology: v6e:2x2x1
jax: 0.10.0
libtpu: 0.0.40
codegen_flags: <defaults>
</compile_context>

<pallas_src>
import jax
import jax.numpy as jnp
from jax.experimental import pallas as pl
from jax.experimental.pallas import tpu as pltpu


def mlp_kernel(x_ref, w1_ref, b1_ref, w2_ref, b2_ref, w3_ref, b3_ref, o_ref):
    # In-kernel bf16 cast of the activation tile (VPU cast, hidden under the DMA).
    x = x_ref[...].astype(jnp.bfloat16)
    # hidden1 + tanh  (bf16 MXU inputs, f32 accumulation; elementwise math in f32)
    h1 = jnp.tanh(
        jnp.dot(x, w1_ref[...], preferred_element_type=jnp.float32) + b1_ref[...]
    )
    # hidden2 + relu
    h2 = jnp.maximum(
        jnp.dot(h1.astype(jnp.bfloat16), w2_ref[...],
                preferred_element_type=jnp.float32) + b2_ref[...],
        0.0,
    )
    # predict (no activation); stored at the true output width (no column padding)
    out = (
        jnp.dot(h2.astype(jnp.bfloat16), w3_ref[...],
                preferred_element_type=jnp.float32) + b3_ref[...]
    )
    o_ref[...] = out.astype(o_ref.dtype)


def _round_up(n, m):
    return ((n + m - 1) // m) * m


def _plan_batch_tiles(B):
    """Pick (tb, B_pad).  tb is a multiple of 16; >=2 tiles whenever B >= 32 so v7x's
    two TensorCores both get work; tile size grows up to 2048 rows for large B."""
    if B < 32:
        tb = _round_up(max(B, 1), 16)
        return tb, tb
    n_tiles = max(2, -(-B // 2048))                 # ceil(B / 2048), at least 2
    tb = min(2048, _round_up(-(-B // n_tiles), 16))  # evenly-sized tiles, x16 rows
    return tb, _round_up(B, tb)


def prepare_params(w1, b1, w2, b2, w3, b3):
    """Hoisted out of the per-call path: cast the MXU operands to bf16 once at init.
    Biases stay f32 (added after the f32 accumulation)."""
    return (w1.astype(jnp.bfloat16), b1.astype(jnp.float32),
            w2.astype(jnp.bfloat16), b2.astype(jnp.float32),
            w3.astype(jnp.bfloat16), b3.astype(jnp.float32))


@jax.jit
def usual_mlp_forward(x, w1_bf, b1, w2_bf, b2, w3_bf, b3):
    B, in_dim = x.shape
    hid = w1_bf.shape[1]
    out_dim = w3_bf.shape[1]

    tb, B_pad = _plan_batch_tiles(B)
    if B_pad != B:                                   # ragged batch -> zero-pad rows
        x = jnp.pad(x, ((0, B_pad - B), (0, 0)))
    grid = (B_pad // tb,)

    full = lambda i: (0, 0)                          # resident blocks (weights/biases)

    # Advisory cost hint for XLA scheduling around the custom call.
    w_bytes = (in_dim * hid + hid * hid + hid * out_dim) * 2 + (2 * hid + out_dim) * 4
    cost = pl.CostEstimate(
        flops=2 * B_pad * (in_dim * hid + hid * hid + hid * out_dim),
        transcendentals=B_pad * hid,                 # tanh
        bytes_accessed=B_pad * in_dim * 4 + w_bytes + B_pad * out_dim * 4,
    )

    # VMEM budget from the real footprint: double-buffered x/out tiles, resident
    # (double-buffered) weights, plus live f32 intermediates; generous headroom but
    # no 32 MiB over-reserve; clamped to 64 MiB so it is valid on v7x.
    tile_io = tb * in_dim * 4 + tb * out_dim * 4
    footprint = 2 * tile_io + 2 * w_bytes + 3 * tb * hid * 4
    vmem_limit = min(max(4 * footprint, 16 << 20), 64 << 20)

    out = pl.pallas_call(
        mlp_kernel,
        out_shape=jax.ShapeDtypeStruct((B_pad, out_dim), jnp.float32),
        grid=grid,
        in_specs=[
            pl.BlockSpec((tb, in_dim), lambda i: (i, 0)),   # x tile (batch-tiled, f32)
            pl.BlockSpec((in_dim, hid), full),              # W1 (resident, bf16)
            pl.BlockSpec((1, hid), full),                   # b1 (f32)
            pl.BlockSpec((hid, hid), full),                 # W2 (bf16)
            pl.BlockSpec((1, hid), full),                   # b2 (f32)
            pl.BlockSpec((hid, out_dim), full),             # W3 (bf16, true width)
            pl.BlockSpec((1, out_dim), full),               # b3 (f32, true width)
        ],
        out_specs=pl.BlockSpec((tb, out_dim), lambda i: (i, 0)),
        compiler_params=pltpu.CompilerParams(
            dimension_semantics=("parallel",),
            vmem_limit_bytes=vmem_limit,
        ),
        cost_estimate=cost,
    )(x, w1_bf, b1, w2_bf, b2, w3_bf, b3)

    return out[:B] if B_pad != B else out


def init_linear(key, fan_in, fan_out):
    """Deterministic init mimicking nn.Linear's default U(-1/sqrt(fan_in), 1/sqrt(fan_in)).
    Returns W as [in, out] and b as [1, out]."""
    kw, kb = jax.random.split(key)
    bound = 1.0 / jnp.sqrt(jnp.float32(fan_in))
    w = jax.random.uniform(kw, (fan_in, fan_out), jnp.float32, -bound, bound)
    b = jax.random.uniform(kb, (1, fan_out), jnp.float32, -bound, bound)
    return w, b


def reference_forward(x, w1, b1, w2, b2, w3, b3):
    h1 = jnp.tanh(x @ w1 + b1)
    h2 = jax.nn.relu(h1 @ w2 + b2)
    return h2 @ w3 + b3


if __name__ == "__main__":
    # Small shapes consistent with usual_MLP(input_num, output_num, hidden_num, k)
    input_num = 16
    output_num = 4
    hidden_num = [32]   # hidden_num[k]
    k = 0
    batch = 16

    key = jax.random.PRNGKey(0)
    kx, k1, k2, k3 = jax.random.split(key, 4)

    x = jax.random.normal(kx, (batch, input_num), jnp.float32)
    w1, b1 = init_linear(k1, input_num, hidden_num[k])
    w2, b2 = init_linear(k2, hidden_num[k], hidden_num[k])
    w3, b3 = init_linear(k3, hidden_num[k], output_num)

    # One-time weight prep (bf16 casts) -- kept out of the per-call hot path.
    params = prepare_params(w1, b1, w2, b2, w3, b3)

    out = usual_mlp_forward(x, *params)
    out = jax.block_until_ready(out)

    ref = reference_forward(x, w1, b1, w2, b2, w3, b3)
    assert out.shape == (batch, output_num), f"bad shape {out.shape}"
    # bf16 MXU inputs with f32 accumulation -> loosened tolerance vs the pure-f32 reference
    assert jnp.allclose(out, ref, atol=3e-2, rtol=3e-2), "mismatch vs reference"

    print("KERNEL_OK")
</pallas_src>

<mosaic_0001>
module attributes {stable_mosaic.version = 11 : i64} {
  func.func @mlp_kernel(%arg0: i32, %arg1: memref<16x16xf32, #tpu.memory_space<vmem>>, %arg2: memref<16x32xbf16, #tpu.memory_space<vmem>>, %arg3: memref<1x32xf32, #tpu.memory_space<vmem>>, %arg4: memref<32x32xbf16, #tpu.memory_space<vmem>>, %arg5: memref<1x32xf32, #tpu.memory_space<vmem>>, %arg6: memref<32x4xbf16, #tpu.memory_space<vmem>>, %arg7: memref<1x4xf32, #tpu.memory_space<vmem>>, %arg8: memref<16x4xf32, #tpu.memory_space<vmem>>) attributes {dimension_semantics = [#tpu.dimension_semantics<parallel>], iteration_bounds = array<i64: 1>, scalar_prefetch = 0 : i64, scratch_operands = 0 : i64, tpu.core_type = #tpu.core_type<tc>, window_params = [{transform_indices = @transform_0, window_bounds = array<i64: 16, 16>}, {pipeline_mode = #tpu.pipeline_mode<synchronous>, transform_indices = @transform_1, window_bounds = array<i64: 16, 32>}, {pipeline_mode = #tpu.pipeline_mode<synchronous>, transform_indices = @transform_2, window_bounds = array<i64: 1, 32>}, {pipeline_mode = #tpu.pipeline_mode<synchronous>, transform_indices = @transform_3, window_bounds = array<i64: 32, 32>}, {pipeline_mode = #tpu.pipeline_mode<synchronous>, transform_indices = @transform_4, window_bounds = array<i64: 1, 32>}, {pipeline_mode = #tpu.pipeline_mode<synchronous>, transform_indices = @transform_5, window_bounds = array<i64: 32, 4>}, {pipeline_mode = #tpu.pipeline_mode<synchronous>, transform_indices = @transform_6, window_bounds = array<i64: 1, 4>}, {transform_indices = @transform_7, window_bounds = array<i64: 16, 4>}]} {
    %c0 = arith.constant 0 : index
    %c0_0 = arith.constant 0 : index
    %0 = vector.load %arg1[%c0, %c0_0] : memref<16x16xf32, #tpu.memory_space<vmem>>, vector<16x16xf32>
    %1 = arith.truncf %0 : vector<16x16xf32> to vector<16x16xbf16>
    %c0_1 = arith.constant 0 : index
    %c0_2 = arith.constant 0 : index
    %2 = vector.load %arg2[%c0_1, %c0_2] : memref<16x32xbf16, #tpu.memory_space<vmem>>, vector<16x32xbf16>
    %cst = arith.constant dense<0.000000e+00> : vector<16x32xf32>
    %3 = tpu.matmul %1, %2, %cst {dimension_numbers = #tpu.dot_dimension_numbers<[1], [0], [0], [1], [0, 0, 1, 1], [], []>} : vector<16x16xbf16>, vector<16x32xbf16>, vector<16x32xf32> -> vector<16x32xf32>
    %c0_3 = arith.constant 0 : index
    %c0_4 = arith.constant 0 : index
    %4 = vector.load %arg3[%c0_3, %c0_4] : memref<1x32xf32, #tpu.memory_space<vmem>>, vector<1x32xf32>
    %5 = vector.broadcast %4 : vector<1x32xf32> to vector<16x32xf32>
    %6 = arith.addf %3, %5 : vector<16x32xf32>
    %7 = math.tanh %6 : vector<16x32xf32>
    %8 = arith.truncf %7 : vector<16x32xf32> to vector<16x32xbf16>
    %c0_5 = arith.constant 0 : index
    %c0_6 = arith.constant 0 : index
    %9 = vector.load %arg4[%c0_5, %c0_6] : memref<32x32xbf16, #tpu.memory_space<vmem>>, vector<32x32xbf16>
    %cst_7 = arith.constant dense<0.000000e+00> : vector<16x32xf32>
    %10 = tpu.matmul %8, %9, %cst_7 {dimension_numbers = #tpu.dot_dimension_numbers<[1], [0], [0], [1], [0, 0, 1, 1], [], []>} : vector<16x32xbf16>, vector<32x32xbf16>, vector<16x32xf32> -> vector<16x32xf32>
    %c0_8 = arith.constant 0 : index
    %c0_9 = arith.constant 0 : index
    %11 = vector.load %arg5[%c0_8, %c0_9] : memref<1x32xf32, #tpu.memory_space<vmem>>, vector<1x32xf32>
    %12 = vector.broadcast %11 : vector<1x32xf32> to vector<16x32xf32>
    %13 = arith.addf %10, %12 : vector<16x32xf32>
    %cst_10 = arith.constant 0.000000e+00 : f32
    %14 = vector.broadcast %cst_10 : f32 to vector<16x32xf32>
    %15 = arith.maximumf %13, %14 : vector<16x32xf32>
    %16 = arith.truncf %15 : vector<16x32xf32> to vector<16x32xbf16>
    %c0_11 = arith.constant 0 : index
    %c0_12 = arith.constant 0 : index
    %17 = vector.load %arg6[%c0_11, %c0_12] : memref<32x4xbf16, #tpu.memory_space<vmem>>, vector<32x4xbf16>
    %cst_13 = arith.constant dense<0.000000e+00> : vector<16x4xf32>
    %18 = tpu.matmul %16, %17, %cst_13 {dimension_numbers = #tpu.dot_dimension_numbers<[1], [0], [0], [1], [0, 0, 1, 1], [], []>} : vector<16x32xbf16>, vector<32x4xbf16>, vector<16x4xf32> -> vector<16x4xf32>
    %c0_14 = arith.constant 0 : index
    %c0_15 = arith.constant 0 : index
    %19 = vector.load %arg7[%c0_14, %c0_15] : memref<1x4xf32, #tpu.memory_space<vmem>>, vector<1x4xf32>
    %20 = vector.broadcast %19 : vector<1x4xf32> to vector<16x4xf32>
    %21 = arith.addf %18, %20 : vector<16x4xf32>
    %c0_16 = arith.constant 0 : index
    %c0_17 = arith.constant 0 : index
    %22 = vector.load %arg8[%c0_16, %c0_17] : memref<16x4xf32, #tpu.memory_space<vmem>>, vector<16x4xf32>
    tpu.vector_store %arg8[%c0_16, %c0_17], %21 {strides = array<i32>} : memref<16x4xf32, #tpu.memory_space<vmem>>, vector<16x4xf32>,
    return
  }
  func.func @transform_0(%arg0: i32) -> (i32, i32) {
    %c0_i32 = arith.constant 0 : i32
    %c0_i32_0 = arith.constant 0 : i32
    return %arg0, %c0_i32 : i32, i32
  }
  func.func @transform_1(%arg0: i32) -> (i32, i32) {
    %c0_i32 = arith.constant 0 : i32
    %c0_i32_0 = arith.constant 0 : i32
    %c0_i32_1 = arith.constant 0 : i32
    return %c0_i32, %c0_i32_0 : i32, i32
  }
  func.func @transform_2(%arg0: i32) -> (i32, i32) {
    %c0_i32 = arith.constant 0 : i32
    %c0_i32_0 = arith.constant 0 : i32
    %c0_i32_1 = arith.constant 0 : i32
    return %c0_i32, %c0_i32_0 : i32, i32
  }
  func.func @transform_3(%arg0: i32) -> (i32, i32) {
    %c0_i32 = arith.constant 0 : i32
    %c0_i32_0 = arith.constant 0 : i32
    %c0_i32_1 = arith.constant 0 : i32
    return %c0_i32, %c0_i32_0 : i32, i32
  }
  func.func @transform_4(%arg0: i32) -> (i32, i32) {
    %c0_i32 = arith.constant 0 : i32
    %c0_i32_0 = arith.constant 0 : i32
    %c0_i32_1 = arith.constant 0 : i32
    return %c0_i32, %c0_i32_0 : i32, i32
  }
  func.func @transform_5(%arg0: i32) -> (i32, i32) {
    %c0_i32 = arith.constant 0 : i32
    %c0_i32_0 = arith.constant 0 : i32
    %c0_i32_1 = arith.constant 0 : i32
    return %c0_i32, %c0_i32_0 : i32, i32
  }
  func.func @transform_6(%arg0: i32) -> (i32, i32) {
    %c0_i32 = arith.constant 0 : i32
    %c0_i32_0 = arith.constant 0 : i32
    %c0_i32_1 = arith.constant 0 : i32
    return %c0_i32, %c0_i32_0 : i32, i32
  }
  func.func @transform_7(%arg0: i32) -> (i32, i32) {
    %c0_i32 = arith.constant 0 : i32
    %c0_i32_0 = arith.constant 0 : i32
    return %arg0, %c0_i32 : i32, i32
  }
}

</mosaic_0001>

<llo_original>
// kernel: usual_mlp_forward.1
$region0: #{usual_mlp_forward.1}
  #allocation0 [shape = 'u32[]', space=smem, size = 0x4, offset = 0x4, fixed_abs, tag = 'smem constant byte address 0x4 - core index']
  #allocation1 [shape = 'u32[144,128]{1,0:T(1,128)}', space=vmem, size = 0x12000, scoped, tag = 'internal scratch']
  %s0 = inlined_call_operand.vmem [shape: f32[16,16], index: 0, kind: input, shape index: {}]
  %s1 = inlined_call_operand.hbm [shape: bf16[16,32], index: 1, kind: input, shape index: {}]
  %s2 = inlined_call_operand.vmem [shape: f32[1,32], index: 2, kind: input, shape index: {}]
  %s3 = inlined_call_operand.hbm [shape: bf16[32,32], index: 3, kind: input, shape index: {}]
  %s4 = inlined_call_operand.vmem [shape: f32[1,32], index: 4, kind: input, shape index: {}]
  %s5 = inlined_call_operand.vmem [shape: bf16[32,4], index: 5, kind: input, shape index: {}]
  %s6 = inlined_call_operand.vmem [shape: f32[1,4], index: 6, kind: input, shape index: {}]
  %s7 = inlined_call_operand.vmem [shape: f32[16,4], index: 7, kind: output, shape index: {}]
  %s8 = sld [smem:[#allocation0]]
  $region46: #{usual_mlp_forward.1} parent=0
    _
  %s10 = ssub.s32 1, %s8
  %s11 = scalar_select 0, %s10, %s8
  $region1: #{usual_mlp_forward.1} parent=0
    #allocation2 [shape = 'u8[4096]{0}', space=vmem, size = 0x1000, scoped, tag = 'input window, operand 1, single buffered']
    #allocation3 [shape = 's32[1]{0}', space=sflag, size = 0x4, scoped, tag = 'scoped memory for usual_mlp_forward.1']
    #allocation4 [shape = 'u8[8192]{0}', space=vmem, size = 0x2000, scoped, tag = 'input window, operand 3, single buffered']
    #allocation5 [shape = 's32[1]{0}', space=sflag, size = 0x4, scoped, tag = 'scoped memory for usual_mlp_forward.1']
    %12 = vsyncpa [#allocation3], 0
    %13 = vsyncpa [#allocation5], 0
    // Predicated region
    $region2: #{usual_mlp_forward.1} parent=1 // pred_check
      _
    $region3: #{usual_mlp_forward.1} parent=1 // pred_check_branch
      %15 = sbr.rel (0) target = $region5
    $region4: #{usual_mlp_forward.1} parent=1 // pred_region
      _
    $region5: #{usual_mlp_forward.1} parent=1 // pred_fallthru
      _
    // Predicated region
    $region6: #{usual_mlp_forward.1} parent=1 // pred_check
      _
    $region7: #{usual_mlp_forward.1} parent=1 // pred_check_branch
      %17 = sbr.rel (0) target = $region9
    $region8: #{usual_mlp_forward.1} parent=1 // pred_region
      %s19 = ssub.s32 128, 128
      %20 = vsyncadd [#allocation3], %s19
      %s21 = sshll.u32 [#allocation2], 4
      %s22 = int_to_ptr.vmem [resolvable:$true] %s21
      %27 = dma.hbm_to_vmem [thread:$0]  %s1, 128, %s22, [#allocation3], 64, 64, 4
    $region9: #{usual_mlp_forward.1} parent=1 // pred_fallthru
      _
    // Predicated region
    $region10: #{usual_mlp_forward.1} parent=1 // pred_check
      _
    $region11: #{usual_mlp_forward.1} parent=1 // pred_check_branch
      %29 = sbr.rel (0) target = $region13
    $region12: #{usual_mlp_forward.1} parent=1 // pred_region
      _
    $region13: #{usual_mlp_forward.1} parent=1 // pred_fallthru
      _
    // Predicated region
    $region14: #{usual_mlp_forward.1} parent=1 // pred_check
      _
    $region15: #{usual_mlp_forward.1} parent=1 // pred_check_branch
      %31 = sbr.rel (0) target = $region17
    $region16: #{usual_mlp_forward.1} parent=1 // pred_region
      %s33 = ssub.s32 256, 256
      %34 = vsyncadd [#allocation5], %s33
      %s35 = sshll.u32 [#allocation4], 4
      %s36 = int_to_ptr.vmem [resolvable:$true] %s35
      %41 = dma.hbm_to_vmem [thread:$0]  %s3, 256, %s36, [#allocation5], 64, 64, 4
    $region17: #{usual_mlp_forward.1} parent=1 // pred_fallthru
      _
    // Predicated region
    $region18: #{usual_mlp_forward.1} parent=1 // pred_check
      _
    $region19: #{usual_mlp_forward.1} parent=1 // pred_check_branch
      %43 = sbr.rel (0) target = $region21
    $region20: #{usual_mlp_forward.1} parent=1 // pred_region
      _
    $region21: #{usual_mlp_forward.1} parent=1 // pred_fallthru
      _
    // Predicated region
    $region22: #{usual_mlp_forward.1} parent=1 // pred_check
      _
    $region23: #{usual_mlp_forward.1} parent=1 // pred_check_branch
      %45 = sbr.rel (0) target = $region25
    $region24: #{usual_mlp_forward.1} parent=1 // pred_region
      _
    $region25: #{usual_mlp_forward.1} parent=1 // pred_fallthru
      _
    // Predicated region
    $region26: #{usual_mlp_forward.1} parent=1 // pred_check
      _
    $region27: #{usual_mlp_forward.1} parent=1 // pred_check_branch
      %47 = sbr.rel (0) target = $region29
    $region28: #{usual_mlp_forward.1} parent=1 // pred_region
      _
    $region29: #{usual_mlp_forward.1} parent=1 // pred_fallthru
      _
    // Predicated region
    $region30: #{usual_mlp_forward.1} parent=1 // pred_check
      _
    $region31: #{usual_mlp_forward.1} parent=1 // pred_check_branch
      %49 = sbr.rel (0) target = $region33
    $region32: #{usual_mlp_forward.1} parent=1 // pred_region
      %50 = dma.done [#allocation3], 128
    $region33: #{usual_mlp_forward.1} parent=1 // pred_fallthru
      _
    // Predicated region
    $region34: #{usual_mlp_forward.1} parent=1 // pred_check
      _
    $region35: #{usual_mlp_forward.1} parent=1 // pred_check_branch
      %52 = sbr.rel (0) target = $region37
    $region36: #{usual_mlp_forward.1} parent=1 // pred_region
      %53 = dma.done [#allocation5], 256
    $region37: #{usual_mlp_forward.1} parent=1 // pred_fallthru
      _
    %v55 = vld [vmem:[%s0] sm:$0xff]
    %v56 = vld [vmem:[%s0 + $0x8] sm:$0xff]
    %v57 = vpack.c.bf16 %v56, %v55
    %v58 = vld [vmem:[#allocation2] sm:$0xf]
    %v59 = vld [vmem:[#allocation2 + $0x4] sm:$0xf]
    %v60 = vld [vmem:[%s2] sm:$0x1]
    %v62 = vlaneseq
    %v63 = vshrl.u32 %v62, 7
    %v64 = vsub.s32 0, %v63
    %v65 = vrot.slane %v60, %v64
    %v69 = vunpack.c.l.b16 %v58
    %v70 = vunpack.c.l.b16 %v59
    %v71 = vpack.c.b16 %v70, %v69
    %vm73 = vcmask 130048
    %v75 = vsel %vm73, %v57, 0
    %77 = vmatprep.subr.bf16.mxu0 0
    %78 = vmatpush1.bf16.msra.mxu0 0
    %79 = vmatprep.subr.bf16.mxu0 0
    %80 = vmatpush1.bf16.msra.mxu0 0
    %81 = vmatprep.subr.bf16.mxu0 0
    %82 = vmatpush1.bf16.msra.mxu0 0
    %83 = vmatprep.subr.bf16.mxu0 0
    %84 = vmatpush1.bf16.msra.mxu0 0
    %85 = vmatprep.subr.bf16.mxu0 0
    %86 = vmatpush1.bf16.msra.mxu0 0
    %87 = vmatprep.subr.bf16.mxu0 0
    %88 = vmatpush1.bf16.msra.mxu0 0
    %89 = vmatprep.subr.bf16.mxu0 0
    %90 = vmatpush1.bf16.msra.mxu0 0
    %91 = vmatprep.subr.bf16.mxu0 0
    %92 = vmatpush1.bf16.msra.mxu0 %v71
    %93 = vmatprep.subr.bf16.mxu0 0
    %94 = vmatpush2.bf16.msra.mxu0 0
    %95 = vmatprep.subr.bf16.mxu0 0
    %96 = vmatpush2.bf16.msra.mxu0 0
    %97 = vmatprep.subr.bf16.mxu0 0
    %98 = vmatpush2.bf16.msra.mxu0 0
    %99 = vmatprep.subr.bf16.mxu0 0
    %100 = vmatpush2.bf16.msra.mxu0 0
    %101 = vmatprep.subr.bf16.mxu0 0
    %102 = vmatpush2.bf16.msra.mxu0 0
    %103 = vmatprep.subr.bf16.mxu0 0
    %104 = vmatpush2.bf16.msra.mxu0 0
    %105 = vmatprep.subr.bf16.mxu0 0
    %106 = vmatpush2.bf16.msra.mxu0 0
    %107 = vmatprep.subr.bf16.mxu0 0
    %108 = vmatpush2.bf16.msra.mxu0 0
    %109 = vmatprep.mubr.bf16.mxu0 0
    %110 = vmatmul.mubr.bf16.gmra.mxu0 %v75
    %v111 = vpop.f32.mrf.mxu0
    %v112 = vadd.f32 %v65, %v111
    %v113 = vpop.f32.mrf.mxu0
    %v114 = vpop.f32.mrf.mxu0
    %v115 = vadd.f32 %v65, %v114
    %v116 = vpop.f32.mrf.mxu0
    %117 = vdwg.mxu0
    %v118 = vtanh.pop %v112
    %v119 = vtanh.pop %v115
    %v120 = vpack.c.bf16 %v119, %v118
    %v121 = vld [vmem:[#allocation4] sm:$0xf]
    %v122 = vld [vmem:[#allocation4 + $0x4] sm:$0xf]
    %v123 = vld [vmem:[#allocation4 + $0x8] sm:$0xf]
    %v124 = vld [vmem:[#allocation4 + $0xc] sm:$0xf]
    %v125 = vld [vmem:[%s4] sm:$0x1]
    %v127 = vlaneseq
    %v128 = vshrl.u32 %v127, 7
    %v129 = vsub.s32 0, %v128
    %v130 = vrot.slane %v125, %v129
    %v136 = vunpack.c.l.b16 %v121
    %v137 = vunpack.c.l.b16 %v122
    %v138 = vunpack.c.l.b16 %v123
    %v139 = vunpack.c.l.b16 %v124
    %v140 = vpack.c.b16 %v137, %v136
    %v141 = vpack.c.b16 %v139, %v138
    %vm144 = vcmask 261120
    %v146 = vsel %vm144, %v120, 0
    %148 = vmatprep.subr.bf16.mxu0 0
    %149 = vmatpush1.bf16.msra.mxu0 0
    %150 = vmatprep.subr.bf16.mxu0 0
    %151 = vmatpush1.bf16.msra.mxu0 0
    %152 = vmatprep.subr.bf16.mxu0 0
    %153 = vmatpush1.bf16.msra.mxu0 0
    %154 = vmatprep.subr.bf16.mxu0 0
    %155 = vmatpush1.bf16.msra.mxu0 0
    %156 = vmatprep.subr.bf16.mxu0 0
    %157 = vmatpush1.bf16.msra.mxu0 0
    %158 = vmatprep.subr.bf16.mxu0 0
    %159 = vmatpush1.bf16.msra.mxu0 0
    %160 = vmatprep.subr.bf16.mxu0 0
    %161 = vmatpush1.bf16.msra.mxu0 %v141
    %162 = vmatprep.subr.bf16.mxu0 0
    %163 = vmatpush1.bf16.msra.mxu0 %v140
    %164 = vmatprep.subr.bf16.mxu0 0
    %165 = vmatpush2.bf16.msra.mxu0 0
    %166 = vmatprep.subr.bf16.mxu0 0
    %167 = vmatpush2.bf16.msra.mxu0 0
    %168 = vmatprep.subr.bf16.mxu0 0
    %169 = vmatpush2.bf16.msra.mxu0 0
    %170 = vmatprep.subr.bf16.mxu0 0
    %171 = vmatpush2.bf16.msra.mxu0 0
    %172 = vmatprep.subr.bf16.mxu0 0
    %173 = vmatpush2.bf16.msra.mxu0 0
    %174 = vmatprep.subr.bf16.mxu0 0
    %175 = vmatpush2.bf16.msra.mxu0 0
    %176 = vmatprep.subr.bf16.mxu0 0
    %177 = vmatpush2.bf16.msra.mxu0 0
    %178 = vmatprep.subr.bf16.mxu0 0
    %179 = vmatpush2.bf16.msra.mxu0 0
    %180 = vmatprep.mubr.bf16.mxu0 0
    %181 = vmatmul.mubr.bf16.gmra.mxu0 %v146
    %v182 = vpop.f32.mrf.mxu0
    %v183 = vadd.f32 %v130, %v182
    %v184 = vpop.f32.mrf.mxu0
    %v185 = vpop.f32.mrf.mxu0
    %v186 = vadd.f32 %v130, %v185
    %v187 = vpop.f32.mrf.mxu0
    %188 = vdwg.mxu0
    %v189 = vmax.f32 %v183, 0.0
    %v190 = vmax.f32 %v186, 0.0
    %v191 = vpack.c.bf16 %v190, %v189
    %v192 = vld [vmem:[%s5] sm:$0xf]
    %v193 = vld [vmem:[%s5 + $0x4] sm:$0xf]
    %v194 = vld [vmem:[%s5 + $0x8] sm:$0xf]
    %v195 = vld [vmem:[%s5 + $0xc] sm:$0xf]
    %v196 = vld [vmem:[%s6] sm:$0x1]
    %v198 = vlaneseq
    %v199 = vshrl.u32 %v198, 7
    %v200 = vsub.s32 0, %v199
    %v201 = vrot.slane %v196, %v200
    %v207 = vunpack.c.l.b16 %v192
    %v208 = vunpack.c.l.b16 %v193
    %v209 = vunpack.c.l.b16 %v194
    %v210 = vunpack.c.l.b16 %v195
    %v211 = vpack.c.b16 %v208, %v207
    %v212 = vpack.c.b16 %v210, %v209
    %v216 = vsel %vm144, %v191, 0
    %218 = vmatprep.subr.bf16.mxu0 0
    %219 = vmatpush1.bf16.msra.mxu0 0
    %220 = vmatprep.subr.bf16.mxu0 0
    %221 = vmatpush1.bf16.msra.mxu0 0
    %222 = vmatprep.subr.bf16.mxu0 0
    %223 = vmatpush1.bf16.msra.mxu0 0
    %224 = vmatprep.subr.bf16.mxu0 0
    %225 = vmatpush1.bf16.msra.mxu0 0
    %226 = vmatprep.subr.bf16.mxu0 0
    %227 = vmatpush1.bf16.msra.mxu0 0
    %228 = vmatprep.subr.bf16.mxu0 0
    %229 = vmatpush1.bf16.msra.mxu0 0
    %230 = vmatprep.subr.bf16.mxu0 0
    %231 = vmatpush1.bf16.msra.mxu0 %v212
    %232 = vmatprep.subr.bf16.mxu0 0
    %233 = vmatpush1.bf16.msra.mxu0 %v211
    %234 = vmatprep.subr.bf16.mxu0 0
    %235 = vmatpush2.bf16.msra.mxu0 0
    %236 = vmatprep.subr.bf16.mxu0 0
    %237 = vmatpush2.bf16.msra.mxu0 0
    %238 = vmatprep.subr.bf16.mxu0 0
    %239 = vmatpush2.bf16.msra.mxu0 0
    %240 = vmatprep.subr.bf16.mxu0 0
    %241 = vmatpush2.bf16.msra.mxu0 0
    %242 = vmatprep.subr.bf16.mxu0 0
    %243 = vmatpush2.bf16.msra.mxu0 0
    %244 = vmatprep.subr.bf16.mxu0 0
    %245 = vmatpush2.bf16.msra.mxu0 0
    %246 = vmatprep.subr.bf16.mxu0 0
    %247 = vmatpush2.bf16.msra.mxu0 0
    %248 = vmatprep.subr.bf16.mxu0 0
    %249 = vmatpush2.bf16.msra.mxu0 0
    %250 = vmatprep.mubr.bf16.mxu0 0
    %251 = vmatmul.mubr.bf16.gmra.mxu0 %v216
    %v252 = vpop.f32.mrf.mxu0
    %v253 = vadd.f32 %v201, %v252
    %v254 = vpop.f32.mrf.mxu0
    %v255 = vpop.f32.mrf.mxu0
    %v256 = vadd.f32 %v201, %v255
    %v257 = vpop.f32.mrf.mxu0
    %258 = vdwg.mxu0
    %vm259 = vcmask 31744
    %260 = vst.msk [vmem:[%s7] sm:$0xff] %vm259, %v253
    %261 = vst.msk [vmem:[%s7 + $0x8] sm:$0xff] %vm259, %v256
    // Predicated region
    $region38: #{usual_mlp_forward.1} parent=1 // pred_check
      _
    $region39: #{usual_mlp_forward.1} parent=1 // pred_check_branch
      %263 = sbr.rel (0) target = $region41
    $region40: #{usual_mlp_forward.1} parent=1 // pred_region
      _
    $region41: #{usual_mlp_forward.1} parent=1 // pred_fallthru
      _
    // Predicated region
    $region42: #{usual_mlp_forward.1} parent=1 // pred_check
      _
    $region43: #{usual_mlp_forward.1} parent=1 // pred_check_branch
      %265 = sbr.rel (0) target = $region45
    $region44: #{usual_mlp_forward.1} parent=1 // pred_region
      _
    $region45: #{usual_mlp_forward.1} parent=1 // pred_fallthru
      _
    %266 = vsyncpa [#allocation3], 1
    %267 = vsyncpa [#allocation5], 1

</llo_original>
